<compile_context>
chip_gen: v5e
topology: v5e:2x2
jax: 0.10.0
libtpu: 0.0.40
codegen_flags: <defaults>
</compile_context>

<pallas_src>
import numpy as np
import jax
import jax.numpy as jnp
from jax import lax
from jax.experimental import pallas as pl
from jax.experimental.pallas import tpu as pltpu

# ---- model dims (enc_dims[-1] == dec_dims[0] as the module asserts) ----
ENC_DIMS = [128, 64, 32]
DEC_DIMS = [32, 64, 128]
D_IN   = ENC_DIMS[0]       # 128
H_ENC  = ENC_DIMS[1]       # 64
LATENT = ENC_DIMS[-1]      # 32
H_DEC  = DEC_DIMS[1]       # 64
D_OUT  = DEC_DIMS[-1]      # 128
LANES  = 128               # padded lane width (lane-dense)
B = 16                     # example batch


def vae_kernel(x_ref, w_ref, b_ref, out_ref):
    x = x_ref[...]                                               # (TM, 128) f32

    # F.normalize(x): x * rsqrt(clamp(sum(x^2), eps^2))  (rsqrt -> EUP slot)
    sumsq = jnp.sum(x * x, axis=1, keepdims=True)
    x = x * lax.rsqrt(jnp.maximum(sumsq, 1e-24))

    # single aligned (8,128) tile load for all four biases; slice in vregs
    b_all = b_ref[...]
    b1, b2, bd1, bd2 = b_all[0:1], b_all[1:2], b_all[2:3], b_all[3:4]

    # all matmuls at K=N=128 with zero-padded lane-dense weight tiles
    # encoder: Linear -> Tanh -> Linear (mu half); eval-mode z = mu
    h = jnp.tanh(jnp.dot(x, w_ref[0], preferred_element_type=jnp.float32) + b1)
    z = jnp.dot(h, w_ref[1], preferred_element_type=jnp.float32) + b2
    # decoder: Linear -> Tanh -> Linear
    y = jnp.tanh(jnp.dot(z, w_ref[2], preferred_element_type=jnp.float32) + bd1)
    y = jnp.dot(y, w_ref[3], preferred_element_type=jnp.float32) + bd2

    out_ref[...] = y.astype(out_ref.dtype)


def pack_params(params):
    """Host-side (numpy), one-time packing into lane-dense padded tiles.

    Weights -> (4, 128, 128) f32 (zero-padded; encoder output keeps only mu half).
    Biases  -> (8, 128) f32 (rows 0..3 = b1, b2_mu, bd1, bd2; rows 4..7 zero).
    """
    w1, b1, w2, b2, wd1, bd1, wd2, bd2 = (np.asarray(p, np.float32) for p in params)
    W = np.zeros((4, LANES, LANES), np.float32)
    W[0, :D_IN,   :H_ENC]  = w1                  # Linear(128, 64)
    W[1, :H_ENC,  :LATENT] = w2[:, :LATENT]      # mu half of Linear(64, 2*32)
    W[2, :LATENT, :H_DEC]  = wd1                 # Linear(32, 64)
    W[3, :H_DEC,  :D_OUT]  = wd2                 # Linear(64, 128)
    Bm = np.zeros((8, LANES), np.float32)
    Bm[0, :H_ENC]  = b1[0]
    Bm[1, :LATENT] = b2[0, :LATENT]
    Bm[2, :H_DEC]  = bd1[0]
    Bm[3, :D_OUT]  = bd2[0]
    return jnp.asarray(W), jnp.asarray(Bm)


def vae_forward(x, w_packed, b_packed, *, row_tile=256):
    """Eval-mode VAE forward.  `w_packed` / `b_packed` come from pack_params (cached)."""
    bsz = x.shape[0]
    tm = bsz if bsz <= row_tile else row_tile        # full-batch block for small B
    grid = (pl.cdiv(bsz, tm),)

    flops = 2 * bsz * (D_IN * H_ENC + H_ENC * LATENT + LATENT * H_DEC + H_DEC * D_OUT)
    transcendentals = bsz * (H_ENC + H_DEC + 1)       # two tanh layers + rsqrt
    bytes_accessed = 4 * (x.size + w_packed.size + b_packed.size + bsz * D_OUT)

    return pl.pallas_call(
        vae_kernel,
        out_shape=jax.ShapeDtypeStruct((bsz, D_OUT), jnp.float32),
        grid_spec=pltpu.PrefetchScalarGridSpec(
            num_scalar_prefetch=0,
            grid=grid,
            in_specs=[
                pl.BlockSpec((tm, D_IN), lambda i: (i, 0)),          # row tile of x
                pl.BlockSpec((4, LANES, LANES), lambda i: (0, 0, 0)),  # weights: VMEM-resident
                pl.BlockSpec((8, LANES), lambda i: (0, 0)),            # biases:  VMEM-resident
            ],
            out_specs=pl.BlockSpec((tm, D_OUT), lambda i: (i, 0)),
        ),
        compiler_params=pltpu.CompilerParams(
            dimension_semantics=("parallel",)),        # row axis splits across TCs (v7x)
        cost_estimate=pl.CostEstimate(
            flops=flops, transcendentals=transcendentals, bytes_accessed=bytes_accessed),
    )(x, w_packed, b_packed)


def init_params(key):
    """Deterministic synthetic parameters (shapes match the module's Linear layers)."""
    ks = jax.random.split(key, 4)

    def lin(k, d_in, d_out):
        kw, kb = jax.random.split(k)
        bound = 1.0 / jnp.sqrt(d_in)
        w = jax.random.uniform(kw, (d_in, d_out), jnp.float32, -bound, bound)
        b = jax.random.uniform(kb, (1, d_out), jnp.float32, -bound, bound)
        return w, b

    w1, b1 = lin(ks[0], ENC_DIMS[0], ENC_DIMS[1])          # Linear(128, 64)
    w2, b2 = lin(ks[1], ENC_DIMS[1], 2 * ENC_DIMS[2])      # Linear(64, 2*32)
    wd1, bd1 = lin(ks[2], DEC_DIMS[0], DEC_DIMS[1])        # Linear(32, 64)
    wd2, bd2 = lin(ks[3], DEC_DIMS[1], DEC_DIMS[2])        # Linear(64, 128)
    return (w1, b1, w2, b2, wd1, bd1, wd2, bd2)


def vae_reference(x, params):
    """Pure-JAX reference mirroring the PyTorch eval-mode forward."""
    w1, b1, w2, b2, wd1, bd1, wd2, bd2 = params
    n = jnp.sqrt(jnp.sum(x * x, axis=1, keepdims=True))
    x = x / jnp.maximum(n, 1e-12)
    h = jnp.tanh(x @ w1 + b1)
    h = h @ w2 + b2
    z = h[:, :LATENT]
    y = jnp.tanh(z @ wd1 + bd1)
    return y @ wd2 + bd2


if __name__ == "__main__":
    key = jax.random.PRNGKey(0)
    k_x, k_p = jax.random.split(key)
    x = jax.random.uniform(k_x, (B, D_IN), jnp.float32)    # e.g. implicit-feedback counts
    params = init_params(k_p)

    # Pack ONCE at init (host-side numpy); reuse across every forward call.
    w_packed, b_packed = pack_params(params)

    out = vae_forward(x, w_packed, b_packed)
    out = jax.block_until_ready(out)

    ref = vae_reference(x, params)
    assert out.shape == (B, D_OUT)
    assert jnp.allclose(out, ref, atol=1e-5, rtol=1e-5), "mismatch vs reference"

    print("KERNEL_OK")
</pallas_src>

<mosaic_0001>
module attributes {stable_mosaic.version = 11 : i64} {
  func.func @vae_kernel(%arg0: i32, %arg1: memref<16x128xf32, #tpu.memory_space<vmem>>, %arg2: memref<4x128x128xf32, #tpu.memory_space<vmem>>, %arg3: memref<8x128xf32, #tpu.memory_space<vmem>>, %arg4: memref<16x128xf32, #tpu.memory_space<vmem>>) attributes {dimension_semantics = [#tpu.dimension_semantics<parallel>], iteration_bounds = array<i64: 1>, scalar_prefetch = 0 : i64, scratch_operands = 0 : i64, tpu.core_type = #tpu.core_type<tc>, window_params = [{transform_indices = @transform_0, window_bounds = array<i64: 16, 128>}, {pipeline_mode = #tpu.pipeline_mode<synchronous>, transform_indices = @transform_1, window_bounds = array<i64: 4, 128, 128>}, {pipeline_mode = #tpu.pipeline_mode<synchronous>, transform_indices = @transform_2, window_bounds = array<i64: 8, 128>}, {transform_indices = @transform_3, window_bounds = array<i64: 16, 128>}]} {
    %c0 = arith.constant 0 : index
    %c0_0 = arith.constant 0 : index
    %0 = vector.load %arg1[%c0, %c0_0] : memref<16x128xf32, #tpu.memory_space<vmem>>, vector<16x128xf32>
    %1 = arith.mulf %0, %0 : vector<16x128xf32>
    %cst = arith.constant dense<0.000000e+00> : vector<16xf32>
    %2 = vector.multi_reduction <add>, %1, %cst [1] : vector<16x128xf32> to vector<16xf32>
    %3 = vector.shape_cast %2 : vector<16xf32> to vector<16x1xf32>
    %cst_1 = arith.constant 1.000000e-24 : f32
    %4 = vector.broadcast %cst_1 : f32 to vector<16x1xf32>
    %5 = arith.maximumf %3, %4 : vector<16x1xf32>
    %6 = math.rsqrt %5 : vector<16x1xf32>
    %7 = vector.broadcast %6 : vector<16x1xf32> to vector<16x128xf32>
    %8 = arith.mulf %0, %7 : vector<16x128xf32>
    %c0_2 = arith.constant 0 : index
    %c0_3 = arith.constant 0 : index
    %9 = vector.load %arg3[%c0_2, %c0_3] : memref<8x128xf32, #tpu.memory_space<vmem>>, vector<8x128xf32>
    %10 = vector.extract_strided_slice %9 {offsets = [0, 0], sizes = [1, 128], strides = [1, 1]} : vector<8x128xf32> to vector<1x128xf32>
    %11 = vector.extract_strided_slice %9 {offsets = [1, 0], sizes = [1, 128], strides = [1, 1]} : vector<8x128xf32> to vector<1x128xf32>
    %12 = vector.extract_strided_slice %9 {offsets = [2, 0], sizes = [1, 128], strides = [1, 1]} : vector<8x128xf32> to vector<1x128xf32>
    %13 = vector.extract_strided_slice %9 {offsets = [3, 0], sizes = [1, 128], strides = [1, 1]} : vector<8x128xf32> to vector<1x128xf32>
    %c0_4 = arith.constant 0 : index
    %c0_5 = arith.constant 0 : index
    %c0_6 = arith.constant 0 : index
    %14 = vector.load %arg2[%c0_4, %c0_5, %c0_6] : memref<4x128x128xf32, #tpu.memory_space<vmem>>, vector<1x128x128xf32>
    %15 = vector.shape_cast %14 : vector<1x128x128xf32> to vector<128x128xf32>
    %cst_7 = arith.constant dense<0.000000e+00> : vector<16x128xf32>
    %16 = tpu.matmul %8, %15, %cst_7 {dimension_numbers = #tpu.dot_dimension_numbers<[1], [0], [0], [1], [0, 0, 1, 1], [], []>} : vector<16x128xf32>, vector<128x128xf32>, vector<16x128xf32> -> vector<16x128xf32>
    %17 = vector.broadcast %10 : vector<1x128xf32> to vector<16x128xf32>
    %18 = arith.addf %16, %17 : vector<16x128xf32>
    %19 = math.tanh %18 : vector<16x128xf32>
    %c1 = arith.constant 1 : index
    %c0_8 = arith.constant 0 : index
    %c0_9 = arith.constant 0 : index
    %20 = vector.load %arg2[%c1, %c0_8, %c0_9] : memref<4x128x128xf32, #tpu.memory_space<vmem>>, vector<1x128x128xf32>
    %21 = vector.shape_cast %20 : vector<1x128x128xf32> to vector<128x128xf32>
    %cst_10 = arith.constant dense<0.000000e+00> : vector<16x128xf32>
    %22 = tpu.matmul %19, %21, %cst_10 {dimension_numbers = #tpu.dot_dimension_numbers<[1], [0], [0], [1], [0, 0, 1, 1], [], []>} : vector<16x128xf32>, vector<128x128xf32>, vector<16x128xf32> -> vector<16x128xf32>
    %23 = vector.broadcast %11 : vector<1x128xf32> to vector<16x128xf32>
    %24 = arith.addf %22, %23 : vector<16x128xf32>
    %c2 = arith.constant 2 : index
    %c0_11 = arith.constant 0 : index
    %c0_12 = arith.constant 0 : index
    %25 = vector.load %arg2[%c2, %c0_11, %c0_12] : memref<4x128x128xf32, #tpu.memory_space<vmem>>, vector<1x128x128xf32>
    %26 = vector.shape_cast %25 : vector<1x128x128xf32> to vector<128x128xf32>
    %cst_13 = arith.constant dense<0.000000e+00> : vector<16x128xf32>
    %27 = tpu.matmul %24, %26, %cst_13 {dimension_numbers = #tpu.dot_dimension_numbers<[1], [0], [0], [1], [0, 0, 1, 1], [], []>} : vector<16x128xf32>, vector<128x128xf32>, vector<16x128xf32> -> vector<16x128xf32>
    %28 = vector.broadcast %12 : vector<1x128xf32> to vector<16x128xf32>
    %29 = arith.addf %27, %28 : vector<16x128xf32>
    %30 = math.tanh %29 : vector<16x128xf32>
    %c3 = arith.constant 3 : index
    %c0_14 = arith.constant 0 : index
    %c0_15 = arith.constant 0 : index
    %31 = vector.load %arg2[%c3, %c0_14, %c0_15] : memref<4x128x128xf32, #tpu.memory_space<vmem>>, vector<1x128x128xf32>
    %32 = vector.shape_cast %31 : vector<1x128x128xf32> to vector<128x128xf32>
    %cst_16 = arith.constant dense<0.000000e+00> : vector<16x128xf32>
    %33 = tpu.matmul %30, %32, %cst_16 {dimension_numbers = #tpu.dot_dimension_numbers<[1], [0], [0], [1], [0, 0, 1, 1], [], []>} : vector<16x128xf32>, vector<128x128xf32>, vector<16x128xf32> -> vector<16x128xf32>
    %34 = vector.broadcast %13 : vector<1x128xf32> to vector<16x128xf32>
    %35 = arith.addf %33, %34 : vector<16x128xf32>
    %c0_17 = arith.constant 0 : index
    %c0_18 = arith.constant 0 : index
    %36 = vector.load %arg4[%c0_17, %c0_18] : memref<16x128xf32, #tpu.memory_space<vmem>>, vector<16x128xf32>
    tpu.vector_store %arg4[%c0_17, %c0_18], %35 {strides = array<i32>} : memref<16x128xf32, #tpu.memory_space<vmem>>, vector<16x128xf32>,
    return
  }
  func.func @transform_0(%arg0: i32) -> (i32, i32) {
    %c0_i32 = arith.constant 0 : i32
    %c0_i32_0 = arith.constant 0 : i32
    return %arg0, %c0_i32 : i32, i32
  }
  func.func @transform_1(%arg0: i32) -> (i32, i32, i32) {
    %c0_i32 = arith.constant 0 : i32
    %c0_i32_0 = arith.constant 0 : i32
    %c0_i32_1 = arith.constant 0 : i32
    %c0_i32_2 = arith.constant 0 : i32
    return %c0_i32, %c0_i32_0, %c0_i32_1 : i32, i32, i32
  }
  func.func @transform_2(%arg0: i32) -> (i32, i32) {
    %c0_i32 = arith.constant 0 : i32
    %c0_i32_0 = arith.constant 0 : i32
    %c0_i32_1 = arith.constant 0 : i32
    return %c0_i32, %c0_i32_0 : i32, i32
  }
  func.func @transform_3(%arg0: i32) -> (i32, i32) {
    %c0_i32 = arith.constant 0 : i32
    %c0_i32_0 = arith.constant 0 : i32
    return %arg0, %c0_i32 : i32, i32
  }
}

</mosaic_0001>

<llo_original>
// kernel: tpu_custom_call.1
$region0: #{tpu_custom_call.1}
  #allocation0 [shape = 'u32[]', space=smem, size = 0x4, offset = 0x4, fixed_abs, tag = 'smem constant byte address 0x4 - core index']
  #allocation1 [shape = 'u32[72,128]{1,0:T(1,128)}', space=vmem, size = 0x9000, scoped, tag = 'internal scratch']
  %s0 = inlined_call_operand.hbm [shape: f32[16,128], index: 0, kind: input, shape index: {}]
  %s1 = inlined_call_operand.hbm [shape: f32[4,128,128], index: 1, kind: input, shape index: {}]
  %s2 = inlined_call_operand.hbm [shape: f32[8,128], index: 2, kind: input, shape index: {}]
  %s3 = inlined_call_operand.hbm [shape: f32[16,128], index: 3, kind: output, shape index: {}]
  %s4 = sld [smem:[#allocation0]]
  $region34: #{tpu_custom_call.1} parent=0
    _
  %s6 = ssub.s32 1, %s4
  %s7 = scalar_select 0, %s6, %s4
  $region1: #{tpu_custom_call.1} parent=0
    #allocation2 [shape = 'u8[8192]{0}', space=vmem, size = 0x2000, scoped, tag = 'input window, operand 0, single buffered']
    #allocation3 [shape = 's32[1]{0}', space=sflag, size = 0x4, scoped, tag = 'scoped memory for tpu_custom_call.1']
    #allocation4 [shape = 's32[1]{0}', space=sflag, size = 0x4, scoped, tag = 'scoped memory for tpu_custom_call.1']
    #allocation5 [shape = 'u8[262144]{0}', space=vmem, size = 0x40000, scoped, tag = 'input window, operand 1, single buffered']
    #allocation6 [shape = 's32[1]{0}', space=sflag, size = 0x4, scoped, tag = 'scoped memory for tpu_custom_call.1']
    #allocation7 [shape = 'u8[4096]{0}', space=vmem, size = 0x1000, scoped, tag = 'input window, operand 2, single buffered']
    #allocation8 [shape = 'u8[8192]{0}', space=vmem, size = 0x2000, scoped, tag = 'output window, operand 0, single buffered']
    %8 = vsyncpa [#allocation3], 0
    %9 = vsyncpa [#allocation6], 0
    %10 = vsyncpa [#allocation4], 0
    // Predicated region
    $region2: #{tpu_custom_call.1} parent=1 // pred_check
      _
    $region3: #{tpu_custom_call.1} parent=1 // pred_check_branch
      %12 = sbr.rel (0) target = $region5
    $region4: #{tpu_custom_call.1} parent=1 // pred_region
      %14 = vsyncadd [#allocation3], 0
      %s15 = sshll.u32 %s0, 4
      %s16 = int_to_ptr.hbm [resolvable:$true] %s15
      %s17 = sshll.u32 [#allocation2], 4
      %s18 = int_to_ptr.vmem [resolvable:$true] %s17
      %23 = dma.hbm_to_vmem [thread:$0]  %s16, 256, %s18, [#allocation3], 128, 128, 8
    $region5: #{tpu_custom_call.1} parent=1 // pred_fallthru
      _
    // Predicated region
    $region6: #{tpu_custom_call.1} parent=1 // pred_check
      _
    $region7: #{tpu_custom_call.1} parent=1 // pred_check_branch
      %25 = sbr.rel (0) target = $region9
    $region8: #{tpu_custom_call.1} parent=1 // pred_region
      %27 = vsyncadd [#allocation6], 0
      %s28 = sshll.u32 %s1, 4
      %s29 = int_to_ptr.hbm [resolvable:$true] %s28
      %s30 = sshll.u32 [#allocation5], 4
      %s31 = int_to_ptr.vmem [resolvable:$true] %s30
      %36 = dma.hbm_to_vmem [thread:$0]  %s29, 8192, %s31, [#allocation6], 128, 128, 8
    $region9: #{tpu_custom_call.1} parent=1 // pred_fallthru
      _
    // Predicated region
    $region10: #{tpu_custom_call.1} parent=1 // pred_check
      _
    $region11: #{tpu_custom_call.1} parent=1 // pred_check_branch
      %38 = sbr.rel (0) target = $region13
    $region12: #{tpu_custom_call.1} parent=1 // pred_region
      %40 = vsyncadd [#allocation6], 0
      %s42 = sshll.u32 %s2, 4
      %s43 = int_to_ptr.hbm [resolvable:$true] %s42
      %s44 = sshll.u32 [#allocation7], 4
      %s45 = int_to_ptr.vmem [resolvable:$true] %s44
      %47 = dma.hbm_to_vmem [thread:$0]  %s43, 128, %s45, [#allocation6]
    $region13: #{tpu_custom_call.1} parent=1 // pred_fallthru
      _
    // Predicated region
    $region14: #{tpu_custom_call.1} parent=1 // pred_check
      _
    $region15: #{tpu_custom_call.1} parent=1 // pred_check_branch
      %49 = sbr.rel (0) target = $region17
    $region16: #{tpu_custom_call.1} parent=1 // pred_region
      %51 = dma.done [#allocation3], 256
    $region17: #{tpu_custom_call.1} parent=1 // pred_fallthru
      _
    // Predicated region
    $region18: #{tpu_custom_call.1} parent=1 // pred_check
      _
    $region19: #{tpu_custom_call.1} parent=1 // pred_check_branch
      %53 = sbr.rel (0) target = $region21
    $region20: #{tpu_custom_call.1} parent=1 // pred_region
      %55 = dma.done [#allocation6], 8192
    $region21: #{tpu_custom_call.1} parent=1 // pred_fallthru
      _
    // Predicated region
    $region22: #{tpu_custom_call.1} parent=1 // pred_check
      _
    $region23: #{tpu_custom_call.1} parent=1 // pred_check_branch
      %57 = sbr.rel (0) target = $region25
    $region24: #{tpu_custom_call.1} parent=1 // pred_region
      %59 = dma.done [#allocation6], 128
    $region25: #{tpu_custom_call.1} parent=1 // pred_fallthru
      _
    %v60 = vld [vmem:[#allocation2] sm:$0xff]
    %v61 = vld [vmem:[#allocation2 + $0x8] sm:$0xff]
    %v62 = vmul.f32 %v60, %v60
    %v63 = vmul.f32 %v61, %v61
    %64 = vadd.xlane.f32.xlu0 %v62
    %v65 = vpop.xlane.xlu0 %64
    %66 = vadd.xlane.f32.xlu0 %v63
    %v67 = vpop.xlane.xlu0 %66
    %v68 = vmax.f32 %v65, 1e-24
    %v69 = vmax.f32 %v67, 1e-24
    %v70 = vrsqrt.pop %v68
    %v71 = vmul.f32 %v70, %v68
    %v72 = vmul.f32 %v71, %v70
    %v73 = vmul.f32 0.5, %v72
    %v74 = vsub.f32 1.5, %v73
    %v75 = vmul.f32 %v70, %v74
    %vm76 = vweird.f32 %v68
    %vm77 = vweird.f32 %v70
    %vm78 = vmor %vm76, %vm77
    %v79 = vsel %vm78, %v70, %v75
    %v80 = vrsqrt.pop %v69
    %v81 = vmul.f32 %v80, %v69
    %v82 = vmul.f32 %v81, %v80
    %v83 = vmul.f32 0.5, %v82
    %v84 = vsub.f32 1.5, %v83
    %v85 = vmul.f32 %v80, %v84
    %vm86 = vweird.f32 %v69
    %vm87 = vweird.f32 %v80
    %vm88 = vmor %vm86, %vm87
    %v89 = vsel %vm88, %v80, %v85
    %v90 = vmul.f32 %v60, %v79
    %v91 = vmul.f32 %v61, %v89
    %v92 = vld [vmem:[#allocation7] sm:$0xff]
    %v93 = vld [vmem:[#allocation5] sm:$0xff]
    %v94 = vld [vmem:[#allocation5 + $0x8] sm:$0xff]
    %v95 = vld [vmem:[#allocation5 + $0x10] sm:$0xff]
    %v96 = vld [vmem:[#allocation5 + $0x18] sm:$0xff]
    %v97 = vld [vmem:[#allocation5 + $0x20] sm:$0xff]
    %v98 = vld [vmem:[#allocation5 + $0x28] sm:$0xff]
    %v99 = vld [vmem:[#allocation5 + $0x30] sm:$0xff]
    %v100 = vld [vmem:[#allocation5 + $0x38] sm:$0xff]
    %v101 = vld [vmem:[#allocation5 + $0x40] sm:$0xff]
    %v102 = vld [vmem:[#allocation5 + $0x48] sm:$0xff]
    %v103 = vld [vmem:[#allocation5 + $0x50] sm:$0xff]
    %v104 = vld [vmem:[#allocation5 + $0x58] sm:$0xff]
    %v105 = vld [vmem:[#allocation5 + $0x60] sm:$0xff]
    %v106 = vld [vmem:[#allocation5 + $0x68] sm:$0xff]
    %v107 = vld [vmem:[#allocation5 + $0x70] sm:$0xff]
    %v108 = vld [vmem:[#allocation5 + $0x78] sm:$0xff]
    %v109 = vperm.slane %v92, 0
    %110 = vmatpush.msra.mxu0 %v108
    %111 = vmatpush.msra.mxu0 %v107
    %112 = vmatpush.msra.mxu0 %v106
    %113 = vmatpush.msra.mxu0 %v105
    %114 = vmatpush.msra.mxu0 %v104
    %115 = vmatpush.msra.mxu0 %v103
    %116 = vmatpush.msra.mxu0 %v102
    %117 = vmatpush.msra.mxu0 %v101
    %118 = vmatpush.msra.mxu0 %v100
    %119 = vmatpush.msra.mxu0 %v99
    %120 = vmatpush.msra.mxu0 %v98
    %121 = vmatpush.msra.mxu0 %v97
    %122 = vmatpush.msra.mxu0 %v96
    %123 = vmatpush.msra.mxu0 %v95
    %124 = vmatpush.msra.mxu0 %v94
    %125 = vmatpush.msra.mxu0 %v93
    %126 = vmatmul.f32.gmra.mxu0 %v90
    %v127 = vpop.f32.mrf.mxu0
    %v128 = vadd.f32 %v109, %v127
    %129 = vmatmul.f32.gmra.mxu0 %v91
    %v130 = vpop.f32.mrf.mxu0
    %v131 = vadd.f32 %v109, %v130
    %132 = vdwg.mxu0
    %v133 = vtanh.pop %v128
    %v134 = vtanh.pop %v131
    %s135 = scalar_lea.vmem [#allocation5], 128
    %v136 = vld [vmem:[%s135] sm:$0xff]
    %v137 = vld [vmem:[%s135 + $0x8] sm:$0xff]
    %v138 = vld [vmem:[%s135 + $0x10] sm:$0xff]
    %v139 = vld [vmem:[%s135 + $0x18] sm:$0xff]
    %v140 = vld [vmem:[%s135 + $0x20] sm:$0xff]
    %v141 = vld [vmem:[%s135 + $0x28] sm:$0xff]
    %v142 = vld [vmem:[%s135 + $0x30] sm:$0xff]
    %v143 = vld [vmem:[%s135 + $0x38] sm:$0xff]
    %v144 = vld [vmem:[%s135 + $0x40] sm:$0xff]
    %v145 = vld [vmem:[%s135 + $0x48] sm:$0xff]
    %v146 = vld [vmem:[%s135 + $0x50] sm:$0xff]
    %v147 = vld [vmem:[%s135 + $0x58] sm:$0xff]
    %v148 = vld [vmem:[%s135 + $0x60] sm:$0xff]
    %v149 = vld [vmem:[%s135 + $0x68] sm:$0xff]
    %v150 = vld [vmem:[%s135 + $0x70] sm:$0xff]
    %v151 = vld [vmem:[%s135 + $0x78] sm:$0xff]
    %v152 = vperm.slane %v92, 1
    %153 = vmatpush.msra.mxu0 %v151
    %154 = vmatpush.msra.mxu0 %v150
    %155 = vmatpush.msra.mxu0 %v149
    %156 = vmatpush.msra.mxu0 %v148
    %157 = vmatpush.msra.mxu0 %v147
    %158 = vmatpush.msra.mxu0 %v146
    %159 = vmatpush.msra.mxu0 %v145
    %160 = vmatpush.msra.mxu0 %v144
    %161 = vmatpush.msra.mxu0 %v143
    %162 = vmatpush.msra.mxu0 %v142
    %163 = vmatpush.msra.mxu0 %v141
    %164 = vmatpush.msra.mxu0 %v140
    %165 = vmatpush.msra.mxu0 %v139
    %166 = vmatpush.msra.mxu0 %v138
    %167 = vmatpush.msra.mxu0 %v137
    %168 = vmatpush.msra.mxu0 %v136
    %169 = vmatmul.f32.gmra.mxu0 %v133
    %v170 = vpop.f32.mrf.mxu0
    %v171 = vadd.f32 %v152, %v170
    %172 = vmatmul.f32.gmra.mxu0 %v134
    %v173 = vpop.f32.mrf.mxu0
    %v174 = vadd.f32 %v152, %v173
    %175 = vdwg.mxu0
    %s176 = scalar_lea.vmem [#allocation5], 256
    %v177 = vld [vmem:[%s176] sm:$0xff]
    %v178 = vld [vmem:[%s176 + $0x8] sm:$0xff]
    %v179 = vld [vmem:[%s176 + $0x10] sm:$0xff]
    %v180 = vld [vmem:[%s176 + $0x18] sm:$0xff]
    %v181 = vld [vmem:[%s176 + $0x20] sm:$0xff]
    %v182 = vld [vmem:[%s176 + $0x28] sm:$0xff]
    %v183 = vld [vmem:[%s176 + $0x30] sm:$0xff]
    %v184 = vld [vmem:[%s176 + $0x38] sm:$0xff]
    %v185 = vld [vmem:[%s176 + $0x40] sm:$0xff]
    %v186 = vld [vmem:[%s176 + $0x48] sm:$0xff]
    %v187 = vld [vmem:[%s176 + $0x50] sm:$0xff]
    %v188 = vld [vmem:[%s176 + $0x58] sm:$0xff]
    %v189 = vld [vmem:[%s176 + $0x60] sm:$0xff]
    %v190 = vld [vmem:[%s176 + $0x68] sm:$0xff]
    %v191 = vld [vmem:[%s176 + $0x70] sm:$0xff]
    %v192 = vld [vmem:[%s176 + $0x78] sm:$0xff]
    %v193 = vperm.slane %v92, 2
    %194 = vmatpush.msra.mxu0 %v192
    %195 = vmatpush.msra.mxu0 %v191
    %196 = vmatpush.msra.mxu0 %v190
    %197 = vmatpush.msra.mxu0 %v189
    %198 = vmatpush.msra.mxu0 %v188
    %199 = vmatpush.msra.mxu0 %v187
    %200 = vmatpush.msra.mxu0 %v186
    %201 = vmatpush.msra.mxu0 %v185
    %202 = vmatpush.msra.mxu0 %v184
    %203 = vmatpush.msra.mxu0 %v183
    %204 = vmatpush.msra.mxu0 %v182
    %205 = vmatpush.msra.mxu0 %v181
    %206 = vmatpush.msra.mxu0 %v180
    %207 = vmatpush.msra.mxu0 %v179
    %208 = vmatpush.msra.mxu0 %v178
    %209 = vmatpush.msra.mxu0 %v177
    %210 = vmatmul.f32.gmra.mxu0 %v171
    %v211 = vpop.f32.mrf.mxu0
    %v212 = vadd.f32 %v193, %v211
    %213 = vmatmul.f32.gmra.mxu0 %v174
    %v214 = vpop.f32.mrf.mxu0
    %v215 = vadd.f32 %v193, %v214
    %216 = vdwg.mxu0
    %v217 = vtanh.pop %v212
    %v218 = vtanh.pop %v215
    %s219 = scalar_lea.vmem [#allocation5], 384
    %v220 = vld [vmem:[%s219] sm:$0xff]
    %v221 = vld [vmem:[%s219 + $0x8] sm:$0xff]
    %v222 = vld [vmem:[%s219 + $0x10] sm:$0xff]
    %v223 = vld [vmem:[%s219 + $0x18] sm:$0xff]
    %v224 = vld [vmem:[%s219 + $0x20] sm:$0xff]
    %v225 = vld [vmem:[%s219 + $0x28] sm:$0xff]
    %v226 = vld [vmem:[%s219 + $0x30] sm:$0xff]
    %v227 = vld [vmem:[%s219 + $0x38] sm:$0xff]
    %v228 = vld [vmem:[%s219 + $0x40] sm:$0xff]
    %v229 = vld [vmem:[%s219 + $0x48] sm:$0xff]
    %v230 = vld [vmem:[%s219 + $0x50] sm:$0xff]
    %v231 = vld [vmem:[%s219 + $0x58] sm:$0xff]
    %v232 = vld [vmem:[%s219 + $0x60] sm:$0xff]
    %v233 = vld [vmem:[%s219 + $0x68] sm:$0xff]
    %v234 = vld [vmem:[%s219 + $0x70] sm:$0xff]
    %v235 = vld [vmem:[%s219 + $0x78] sm:$0xff]
    %v236 = vperm.slane %v92, 3
    %237 = vmatpush.msra.mxu0 %v235
    %238 = vmatpush.msra.mxu0 %v234
    %239 = vmatpush.msra.mxu0 %v233
    %240 = vmatpush.msra.mxu0 %v232
    %241 = vmatpush.msra.mxu0 %v231
    %242 = vmatpush.msra.mxu0 %v230
    %243 = vmatpush.msra.mxu0 %v229
    %244 = vmatpush.msra.mxu0 %v228
    %245 = vmatpush.msra.mxu0 %v227
    %246 = vmatpush.msra.mxu0 %v226
    %247 = vmatpush.msra.mxu0 %v225
    %248 = vmatpush.msra.mxu0 %v224
    %249 = vmatpush.msra.mxu0 %v223
    %250 = vmatpush.msra.mxu0 %v222
    %251 = vmatpush.msra.mxu0 %v221
    %252 = vmatpush.msra.mxu0 %v220
    %253 = vmatmul.f32.gmra.mxu0 %v217
    %v254 = vpop.f32.mrf.mxu0
    %v255 = vadd.f32 %v236, %v254
    %256 = vmatmul.f32.gmra.mxu0 %v218
    %v257 = vpop.f32.mrf.mxu0
    %v258 = vadd.f32 %v236, %v257
    %259 = vdwg.mxu0
    %260 = vst [vmem:[#allocation8] sm:$0xff] %v255
    %261 = vst [vmem:[#allocation8 + $0x8] sm:$0xff] %v258
    // Predicated region
    $region26: #{tpu_custom_call.1} parent=1 // pred_check
      _
    $region27: #{tpu_custom_call.1} parent=1 // pred_check_branch
      %263 = sbr.rel (0) target = $region29
    $region28: #{tpu_custom_call.1} parent=1 // pred_region
      %265 = vsyncadd [#allocation4], 0
      %s266 = sshll.u32 [#allocation8], 4
      %s267 = int_to_ptr.vmem [resolvable:$true] %s266
      %s268 = sshll.u32 %s3, 4
      %s269 = int_to_ptr.hbm [resolvable:$true] %s268
      %274 = dma.vmem_to_hbm [thread:$0]  %s267, 256, %s269, [#allocation4], 128, 128, 8
    $region29: #{tpu_custom_call.1} parent=1 // pred_fallthru
      _
    // Predicated region
    $region30: #{tpu_custom_call.1} parent=1 // pred_check
      _
    $region31: #{tpu_custom_call.1} parent=1 // pred_check_branch
      %276 = sbr.rel (0) target = $region33
    $region32: #{tpu_custom_call.1} parent=1 // pred_region
      %278 = dma.done [#allocation4], 256
    $region33: #{tpu_custom_call.1} parent=1 // pred_fallthru
      _
    %279 = vsyncpa [#allocation3], 1
    %280 = vsyncpa [#allocation6], 1
    %281 = vsyncpa [#allocation4], 1

</llo_original>
